<compile_context>
chip_gen: v7x
topology: tpu7x:2x2x1
jax: 0.10.0
libtpu: 0.0.40
codegen_flags: <defaults>
</compile_context>

<pallas_src>
import functools

import jax
import jax.numpy as jnp
from jax.experimental import pallas as pl
from jax.experimental.pallas import tpu as pltpu

BN_EPS = 1e-5
LANE = 128
# Fused path keeps every operand and all activations VMEM-resident.  Gate at a
# budget that is safe on every generation (v7x has only 64 MiB physical VMEM).
VMEM_BUDGET_BYTES = 48 * 1024 * 1024


def _pad_to_lane(d):
    return ((d + LANE - 1) // LANE) * LANE


def _make_fused_mlp_kernel(num_hidden):
    """Fused kernel: num_hidden x (Linear -> BN(train) -> ReLU) + plain Linear.

    Kernel operands (all whole-array VMEM refs):
      x_ref,
      [w_0, gb_0, w_1, gb_1, ..., w_{H-1}, gb_{H-1}],   # hidden layers
      w_last, b_last,
      o_ref
    where gb_i is a packed (2, D) f32 array: row 0 = gamma, row 1 = beta.
    Weights and activations are bf16 (MXU-native); stats / normalize in f32.
    """

    def kernel(*refs):
        x_ref = refs[0]
        o_ref = refs[-1]
        p = refs[1:-1]

        x = x_ref[...]                      # (N, D_in_pad) bf16
        inv_n = 1.0 / x.shape[0]

        # Hidden layers: Linear -> BatchNorm1d (batch stats, biased var) -> ReLU
        for i in range(num_hidden):
            w = p[2 * i][...]               # (D_in_pad, D_out_pad) bf16
            gb = p[2 * i + 1]               # (2, D_out_pad) f32: gamma, beta
            # Hidden bias skipped: BN's mean subtraction cancels it exactly.
            y = jnp.dot(x, w, preferred_element_type=jnp.float32)
            # One-pass stats: var = E[y^2] - mean^2 in f32 (matches PyTorch's
            # biased normalization variance in training mode).  Inputs here are
            # post-BN activations, so cancellation risk is low at these scales.
            mean = jnp.sum(y, axis=0, keepdims=True) * inv_n
            var = jnp.sum(y * y, axis=0, keepdims=True) * inv_n - mean * mean
            inv_std = jax.lax.rsqrt(var + BN_EPS)          # EUP slot
            scale = inv_std * gb[0:1, :]                   # (1, D) cheap
            shift = gb[1:2, :] - mean * scale              # (1, D) cheap
            # 2 VALU ops + max per (N, D) element; next matmul wants bf16.
            x = jnp.maximum(y * scale + shift, 0.0).astype(jnp.bfloat16)

        # plain_last=True: final layer is Linear only (dropout p=0 is a no-op).
        w = p[2 * num_hidden][...]          # (D_pad, D_out_pad) bf16
        b = p[2 * num_hidden + 1][...]      # (1, D_out_pad) f32
        y = jnp.dot(x, w, preferred_element_type=jnp.float32) + b
        o_ref[...] = y.astype(o_ref.dtype)

    return kernel


def prepare_params(params):
    """Pad / pack / cast parameters ONCE (call outside the per-step forward).

    params: tuple of (w[d_in, d_out], b[1, d_out], gamma[1, d_out],
            beta[1, d_out]) per layer.
    Returns a flat tuple:
      (w_0, gb_0, ..., w_{H-1}, gb_{H-1}, w_last, b_last)
    with weights zero-padded to lane multiples and cast to bf16; gamma/beta
    packed into a (2, D_pad) f32 array; hidden biases dropped (BN cancels
    them); last-layer bias kept as (1, D_pad) f32.
    Zero padding is exact: padded columns stay identically 0 through
    Linear -> BN -> ReLU, so results are unchanged after slicing.
    """
    num_layers = len(params)
    packed = []
    for i, (w, b, gamma, beta) in enumerate(params):
        d_in, d_out = w.shape
        dp_in, dp_out = _pad_to_lane(d_in), _pad_to_lane(d_out)
        w_p = (jnp.zeros((dp_in, dp_out), jnp.float32)
               .at[:d_in, :d_out].set(w.astype(jnp.float32))
               .astype(jnp.bfloat16))
        if i < num_layers - 1:
            gb = jnp.zeros((2, dp_out), jnp.float32)
            gb = gb.at[0, :d_out].set(gamma.reshape(-1))
            gb = gb.at[1, :d_out].set(beta.reshape(-1))
            packed += [w_p, gb]
        else:
            b_p = jnp.zeros((1, dp_out), jnp.float32).at[0, :d_out].set(
                b.reshape(-1))
            packed += [w_p, b_p]
    return tuple(jax.device_put(a) for a in packed)


@functools.partial(jax.jit, static_argnames=("out_dims",))
def mlp_forward(x, packed, out_dims):
    """Fused MLP forward.  `packed` comes from prepare_params (done once)."""
    n, in_dims = x.shape
    num_hidden = len(packed) // 2 - 1
    out_pad = packed[-1].shape[1]

    # Lane-pad the input and cast to bf16 for the MXU (batch left un-padded:
    # BN statistics must run over exactly the logical rows).
    in_pad = _pad_to_lane(in_dims)
    if in_pad == in_dims:
        x_p = x.astype(jnp.bfloat16)
    else:
        x_p = jnp.zeros((n, in_pad), jnp.bfloat16).at[:, :in_dims].set(
            x.astype(jnp.bfloat16))

    operands = (x_p,) + tuple(packed)

    # --- VMEM budget derived from the actual footprint ----------------------
    d_max_pad = max(int(a.shape[-1]) for a in operands)
    operand_bytes = sum(int(a.size) * jnp.dtype(a.dtype).itemsize
                        for a in operands)
    out_bytes = n * out_pad * jnp.dtype(x.dtype).itemsize
    act_bytes = 3 * n * d_max_pad * 4        # ~3 live (N, Dmax) f32 temps
    required = operand_bytes + out_bytes + act_bytes
    if required > VMEM_BUDGET_BYTES:
        # TODO(synk): fall back to a batch-tiled two-pass BN variant here.
        raise NotImplementedError(
            f"fused MLP kernel needs ~{required} B of VMEM "
            f"(> {VMEM_BUDGET_BYTES} B budget); use a batch-tiled variant")
    vmem_limit = int(min(VMEM_BUDGET_BYTES,
                         max(2 * required, 2 * 1024 * 1024)))

    flops = 0
    for li in range(num_hidden + 1):
        w_li = packed[2 * li]
        flops += 2 * n * int(w_li.shape[0]) * int(w_li.shape[1])

    vmem_spec = pl.BlockSpec(memory_space=pltpu.MemorySpace.VMEM)
    out_p = pl.pallas_call(
        _make_fused_mlp_kernel(num_hidden),
        out_shape=jax.ShapeDtypeStruct((n, out_pad), x.dtype),
        in_specs=[vmem_spec] * len(operands),
        out_specs=vmem_spec,
        compiler_params=pltpu.CompilerParams(vmem_limit_bytes=vmem_limit),
        cost_estimate=pl.CostEstimate(
            flops=flops,
            transcendentals=num_hidden * d_max_pad,
            bytes_accessed=operand_bytes + out_bytes),
    )(*operands)

    if out_pad == out_dims:
        return out_p
    # Single cheap slice back to the logical width (output already in x.dtype).
    return out_p[:, :out_dims]


def init_mlp_params(key, in_dims, hidden_dims, out_dims, num_layers):
    """Init mirroring torch.nn.Linear (U(-1/sqrt(fan_in), +)) and
    BatchNorm1d (gamma=1, beta=0). Weights stored transposed [d_in, d_out]."""
    dim_list = [in_dims] + [hidden_dims] * (num_layers - 1) + [out_dims]
    params = []
    for d_in, d_out in zip(dim_list[:-1], dim_list[1:]):
        key, kw, kb = jax.random.split(key, 3)
        bound = 1.0 / (d_in ** 0.5)
        w = jax.random.uniform(kw, (d_in, d_out), jnp.float32, -bound, bound)
        b = jax.random.uniform(kb, (1, d_out), jnp.float32, -bound, bound)
        gamma = jnp.ones((1, d_out), jnp.float32)
        beta = jnp.zeros((1, d_out), jnp.float32)
        params.append((w, b, gamma, beta))
    return tuple(params)


def mlp_reference(x, params):
    """Pure-JAX f32 reference (two-pass BN, with hidden bias) for checking."""
    n_layers = len(params)
    for i, (w, b, gamma, beta) in enumerate(params):
        y = x @ w + b
        if i < n_layers - 1:
            mean = y.mean(axis=0, keepdims=True)
            var = ((y - mean) ** 2).mean(axis=0, keepdims=True)
            y = (y - mean) / jnp.sqrt(var + BN_EPS) * gamma + beta
            y = jnp.maximum(y, 0.0)
        x = y
    return x


if __name__ == "__main__":
    key = jax.random.PRNGKey(0)
    kx, kp = jax.random.split(key)

    # MLP(in_dims=16, hidden_dims=32, out_dims=8, num_layers=3)
    in_dims, hidden_dims, out_dims, num_layers = 16, 32, 8, 3
    batch = 8  # multiple of 8 (f32 sublane)

    x = jax.random.normal(kx, (batch, in_dims), jnp.float32)
    params = init_mlp_params(kp, in_dims, hidden_dims, out_dims, num_layers)

    # Pack / pad / cast once (NOT per forward call).
    packed = prepare_params(params)

    out = mlp_forward(x, packed, out_dims)
    out = jax.block_until_ready(out)

    ref = mlp_reference(x, params)
    assert out.shape == (batch, out_dims)
    # Tolerance accounts for bf16 matmul operands (stats / normalize are f32).
    max_err = float(jnp.max(jnp.abs(out - ref)))
    assert jnp.allclose(out, ref, atol=2e-2, rtol=2e-2), (
        f"mismatch vs reference, max abs err = {max_err}")

    print("KERNEL_OK")
</pallas_src>

<mosaic_0001>
module attributes {stable_mosaic.version = 11 : i64} {
  func.func @kernel(%arg0: memref<8x128xbf16, #tpu.memory_space<vmem>>, %arg1: memref<128x128xbf16, #tpu.memory_space<vmem>>, %arg2: memref<2x128xf32, #tpu.memory_space<vmem>>, %arg3: memref<128x128xbf16, #tpu.memory_space<vmem>>, %arg4: memref<2x128xf32, #tpu.memory_space<vmem>>, %arg5: memref<128x128xbf16, #tpu.memory_space<vmem>>, %arg6: memref<1x128xf32, #tpu.memory_space<vmem>>, %arg7: memref<8x128xf32, #tpu.memory_space<vmem>>) attributes {dimension_semantics = [], scalar_prefetch = 0 : i64, scratch_operands = 0 : i64, tpu.core_type = #tpu.core_type<tc>} {
    %c0 = arith.constant 0 : index
    %c0_0 = arith.constant 0 : index
    %0 = vector.load %arg0[%c0, %c0_0] : memref<8x128xbf16, #tpu.memory_space<vmem>>, vector<8x128xbf16>
    %c0_1 = arith.constant 0 : index
    %c0_2 = arith.constant 0 : index
    %1 = vector.load %arg1[%c0_1, %c0_2] : memref<128x128xbf16, #tpu.memory_space<vmem>>, vector<128x128xbf16>
    %cst = arith.constant dense<0.000000e+00> : vector<8x128xf32>
    %2 = tpu.matmul %0, %1, %cst {dimension_numbers = #tpu.dot_dimension_numbers<[1], [0], [0], [1], [0, 0, 1, 1], [], []>} : vector<8x128xbf16>, vector<128x128xbf16>, vector<8x128xf32> -> vector<8x128xf32>
    %cst_3 = arith.constant dense<0.000000e+00> : vector<128xf32>
    %3 = vector.multi_reduction <add>, %2, %cst_3 [0] : vector<8x128xf32> to vector<128xf32>
    %4 = vector.shape_cast %3 : vector<128xf32> to vector<1x128xf32>
    %cst_4 = arith.constant 1.250000e-01 : f32
    %5 = vector.broadcast %cst_4 : f32 to vector<1x128xf32>
    %6 = arith.mulf %4, %5 : vector<1x128xf32>
    %7 = arith.mulf %2, %2 : vector<8x128xf32>
    %cst_5 = arith.constant dense<0.000000e+00> : vector<128xf32>
    %8 = vector.multi_reduction <add>, %7, %cst_5 [0] : vector<8x128xf32> to vector<128xf32>
    %9 = vector.shape_cast %8 : vector<128xf32> to vector<1x128xf32>
    %cst_6 = arith.constant 1.250000e-01 : f32
    %10 = vector.broadcast %cst_6 : f32 to vector<1x128xf32>
    %11 = arith.mulf %9, %10 : vector<1x128xf32>
    %12 = arith.mulf %6, %6 : vector<1x128xf32>
    %13 = arith.subf %11, %12 : vector<1x128xf32>
    %cst_7 = arith.constant 9.99999974E-6 : f32
    %14 = vector.broadcast %cst_7 : f32 to vector<1x128xf32>
    %15 = arith.addf %13, %14 : vector<1x128xf32>
    %16 = math.rsqrt %15 : vector<1x128xf32>
    %c0_8 = arith.constant 0 : index
    %c0_9 = arith.constant 0 : index
    %17 = vector.load %arg2[%c0_8, %c0_9] : memref<2x128xf32, #tpu.memory_space<vmem>>, vector<1x128xf32>
    %18 = arith.mulf %16, %17 : vector<1x128xf32>
    %c1 = arith.constant 1 : index
    %c0_10 = arith.constant 0 : index
    %19 = vector.load %arg2[%c1, %c0_10] : memref<2x128xf32, #tpu.memory_space<vmem>>, vector<1x128xf32>
    %20 = arith.mulf %6, %18 : vector<1x128xf32>
    %21 = arith.subf %19, %20 : vector<1x128xf32>
    %22 = vector.broadcast %18 : vector<1x128xf32> to vector<8x128xf32>
    %23 = arith.mulf %2, %22 : vector<8x128xf32>
    %24 = vector.broadcast %21 : vector<1x128xf32> to vector<8x128xf32>
    %25 = arith.addf %23, %24 : vector<8x128xf32>
    %cst_11 = arith.constant 0.000000e+00 : f32
    %26 = vector.broadcast %cst_11 : f32 to vector<8x128xf32>
    %27 = arith.maximumf %25, %26 : vector<8x128xf32>
    %28 = arith.truncf %27 : vector<8x128xf32> to vector<8x128xbf16>
    %c0_12 = arith.constant 0 : index
    %c0_13 = arith.constant 0 : index
    %29 = vector.load %arg3[%c0_12, %c0_13] : memref<128x128xbf16, #tpu.memory_space<vmem>>, vector<128x128xbf16>
    %cst_14 = arith.constant dense<0.000000e+00> : vector<8x128xf32>
    %30 = tpu.matmul %28, %29, %cst_14 {dimension_numbers = #tpu.dot_dimension_numbers<[1], [0], [0], [1], [0, 0, 1, 1], [], []>} : vector<8x128xbf16>, vector<128x128xbf16>, vector<8x128xf32> -> vector<8x128xf32>
    %cst_15 = arith.constant dense<0.000000e+00> : vector<128xf32>
    %31 = vector.multi_reduction <add>, %30, %cst_15 [0] : vector<8x128xf32> to vector<128xf32>
    %32 = vector.shape_cast %31 : vector<128xf32> to vector<1x128xf32>
    %cst_16 = arith.constant 1.250000e-01 : f32
    %33 = vector.broadcast %cst_16 : f32 to vector<1x128xf32>
    %34 = arith.mulf %32, %33 : vector<1x128xf32>
    %35 = arith.mulf %30, %30 : vector<8x128xf32>
    %cst_17 = arith.constant dense<0.000000e+00> : vector<128xf32>
    %36 = vector.multi_reduction <add>, %35, %cst_17 [0] : vector<8x128xf32> to vector<128xf32>
    %37 = vector.shape_cast %36 : vector<128xf32> to vector<1x128xf32>
    %cst_18 = arith.constant 1.250000e-01 : f32
    %38 = vector.broadcast %cst_18 : f32 to vector<1x128xf32>
    %39 = arith.mulf %37, %38 : vector<1x128xf32>
    %40 = arith.mulf %34, %34 : vector<1x128xf32>
    %41 = arith.subf %39, %40 : vector<1x128xf32>
    %cst_19 = arith.constant 9.99999974E-6 : f32
    %42 = vector.broadcast %cst_19 : f32 to vector<1x128xf32>
    %43 = arith.addf %41, %42 : vector<1x128xf32>
    %44 = math.rsqrt %43 : vector<1x128xf32>
    %c0_20 = arith.constant 0 : index
    %c0_21 = arith.constant 0 : index
    %45 = vector.load %arg4[%c0_20, %c0_21] : memref<2x128xf32, #tpu.memory_space<vmem>>, vector<1x128xf32>
    %46 = arith.mulf %44, %45 : vector<1x128xf32>
    %c1_22 = arith.constant 1 : index
    %c0_23 = arith.constant 0 : index
    %47 = vector.load %arg4[%c1_22, %c0_23] : memref<2x128xf32, #tpu.memory_space<vmem>>, vector<1x128xf32>
    %48 = arith.mulf %34, %46 : vector<1x128xf32>
    %49 = arith.subf %47, %48 : vector<1x128xf32>
    %50 = vector.broadcast %46 : vector<1x128xf32> to vector<8x128xf32>
    %51 = arith.mulf %30, %50 : vector<8x128xf32>
    %52 = vector.broadcast %49 : vector<1x128xf32> to vector<8x128xf32>
    %53 = arith.addf %51, %52 : vector<8x128xf32>
    %cst_24 = arith.constant 0.000000e+00 : f32
    %54 = vector.broadcast %cst_24 : f32 to vector<8x128xf32>
    %55 = arith.maximumf %53, %54 : vector<8x128xf32>
    %56 = arith.truncf %55 : vector<8x128xf32> to vector<8x128xbf16>
    %c0_25 = arith.constant 0 : index
    %c0_26 = arith.constant 0 : index
    %57 = vector.load %arg5[%c0_25, %c0_26] : memref<128x128xbf16, #tpu.memory_space<vmem>>, vector<128x128xbf16>
    %c0_27 = arith.constant 0 : index
    %c0_28 = arith.constant 0 : index
    %58 = vector.load %arg6[%c0_27, %c0_28] : memref<1x128xf32, #tpu.memory_space<vmem>>, vector<1x128xf32>
    %cst_29 = arith.constant dense<0.000000e+00> : vector<8x128xf32>
    %59 = tpu.matmul %56, %57, %cst_29 {dimension_numbers = #tpu.dot_dimension_numbers<[1], [0], [0], [1], [0, 0, 1, 1], [], []>} : vector<8x128xbf16>, vector<128x128xbf16>, vector<8x128xf32> -> vector<8x128xf32>
    %60 = vector.broadcast %58 : vector<1x128xf32> to vector<8x128xf32>
    %61 = arith.addf %59, %60 : vector<8x128xf32>
    %c0_30 = arith.constant 0 : index
    %c0_31 = arith.constant 0 : index
    %62 = vector.load %arg7[%c0_30, %c0_31] : memref<8x128xf32, #tpu.memory_space<vmem>>, vector<8x128xf32>
    tpu.vector_store %arg7[%c0_30, %c0_31], %61 {strides = array<i32>} : memref<8x128xf32, #tpu.memory_space<vmem>>, vector<8x128xf32>,
    return
  }
}

</mosaic_0001>

<llo_original>
// kernel: mlp_forward.1
$region0: #{mlp_forward.1}
  #allocation0 [shape = 'u32[]', space=smem, size = 0x4, offset = 0x4, fixed_abs, tag = 'smem constant byte address 0x4 - core index']
  #allocation1 [shape = 'u32[144,128]{1,0:T(1,128)}', space=vmem, size = 0x12000, scoped, tag = 'internal scratch']
  %s0 = inlined_call_operand.vmem [shape: bf16[8,128], index: 0, kind: input, shape index: {}]
  %s1 = inlined_call_operand.hbm [shape: bf16[128,128], index: 1, kind: input, shape index: {}]
  %s2 = inlined_call_operand.vmem [shape: f32[2,128], index: 2, kind: input, shape index: {}]
  %s3 = inlined_call_operand.hbm [shape: bf16[128,128], index: 3, kind: input, shape index: {}]
  %s4 = inlined_call_operand.vmem [shape: f32[2,128], index: 4, kind: input, shape index: {}]
  %s5 = inlined_call_operand.hbm [shape: bf16[128,128], index: 5, kind: input, shape index: {}]
  %s6 = inlined_call_operand.vmem [shape: f32[1,128], index: 6, kind: input, shape index: {}]
  %s7 = inlined_call_operand.hbm [shape: f32[8,128], index: 7, kind: output, shape index: {}]
  %s8 = sld [smem:[#allocation0]]
  $region50: #{mlp_forward.1} parent=0
    _
  %s10 = ssub.s32 1, %s8
  %s11 = scalar_select 0, %s10, %s8
  $region1: #{mlp_forward.1} parent=0
    #allocation2 [shape = 'u8[32768]{0}', space=vmem, size = 0x8000, scoped, tag = 'input window, operand 1, single buffered']
    #allocation3 [shape = 's32[1]{0}', space=sflag, size = 0x4, scoped, tag = 'scoped memory for mlp_forward.1']
    #allocation4 [shape = 's32[1]{0}', space=sflag, size = 0x4, scoped, tag = 'scoped memory for mlp_forward.1']
    #allocation5 [shape = 'u8[32768]{0}', space=vmem, size = 0x8000, scoped, tag = 'input window, operand 3, single buffered']
    #allocation6 [shape = 's32[1]{0}', space=sflag, size = 0x4, scoped, tag = 'scoped memory for mlp_forward.1']
    #allocation7 [shape = 'u8[32768]{0}', space=vmem, size = 0x8000, scoped, tag = 'input window, operand 5, single buffered']
    #allocation8 [shape = 'u8[4096]{0}', space=vmem, size = 0x1000, scoped, tag = 'output window, operand 0, single buffered']
    %12 = vsyncpa [#allocation3], 0
    %13 = vsyncpa [#allocation6], 0
    %14 = vsyncpa [#allocation4], 0
    // Predicated region
    $region2: #{mlp_forward.1} parent=1 // pred_check
      _
    $region3: #{mlp_forward.1} parent=1 // pred_check_branch
      %16 = sbr.rel (0) target = $region5
    $region4: #{mlp_forward.1} parent=1 // pred_region
      _
    $region5: #{mlp_forward.1} parent=1 // pred_fallthru
      _
    // Predicated region
    $region6: #{mlp_forward.1} parent=1 // pred_check
      _
    $region7: #{mlp_forward.1} parent=1 // pred_check_branch
      %18 = sbr.rel (0) target = $region9
    $region8: #{mlp_forward.1} parent=1 // pred_region
      %s20 = ssub.s32 1024, 1024
      %21 = vsyncadd [#allocation3], %s20
      %s22 = sshll.u32 [#allocation2], 4
      %s23 = int_to_ptr.vmem [resolvable:$true] %s22
      %28 = dma.hbm_to_vmem [thread:$0]  %s1, 1024, %s23, [#allocation3], 64, 64, 4
    $region9: #{mlp_forward.1} parent=1 // pred_fallthru
      _
    // Predicated region
    $region10: #{mlp_forward.1} parent=1 // pred_check
      _
    $region11: #{mlp_forward.1} parent=1 // pred_check_branch
      %30 = sbr.rel (0) target = $region13
    $region12: #{mlp_forward.1} parent=1 // pred_region
      _
    $region13: #{mlp_forward.1} parent=1 // pred_fallthru
      _
    // Predicated region
    $region14: #{mlp_forward.1} parent=1 // pred_check
      _
    $region15: #{mlp_forward.1} parent=1 // pred_check_branch
      %32 = sbr.rel (0) target = $region17
    $region16: #{mlp_forward.1} parent=1 // pred_region
      %s34 = ssub.s32 1024, 1024
      %35 = vsyncadd [#allocation6], %s34
      %s36 = sshll.u32 [#allocation5], 4
      %s37 = int_to_ptr.vmem [resolvable:$true] %s36
      %42 = dma.hbm_to_vmem [thread:$0]  %s3, 1024, %s37, [#allocation6], 64, 64, 4
    $region17: #{mlp_forward.1} parent=1 // pred_fallthru
      _
    // Predicated region
    $region18: #{mlp_forward.1} parent=1 // pred_check
      _
    $region19: #{mlp_forward.1} parent=1 // pred_check_branch
      %44 = sbr.rel (0) target = $region21
    $region20: #{mlp_forward.1} parent=1 // pred_region
      _
    $region21: #{mlp_forward.1} parent=1 // pred_fallthru
      _
    // Predicated region
    $region22: #{mlp_forward.1} parent=1 // pred_check
      _
    $region23: #{mlp_forward.1} parent=1 // pred_check_branch
      %46 = sbr.rel (0) target = $region25
    $region24: #{mlp_forward.1} parent=1 // pred_region
      %s48 = ssub.s32 1024, 1024
      %49 = vsyncadd [#allocation6], %s48
      %s50 = sshll.u32 [#allocation7], 4
      %s51 = int_to_ptr.vmem [resolvable:$true] %s50
      %56 = dma.hbm_to_vmem [thread:$0]  %s5, 1024, %s51, [#allocation6], 64, 64, 4
    $region25: #{mlp_forward.1} parent=1 // pred_fallthru
      _
    // Predicated region
    $region26: #{mlp_forward.1} parent=1 // pred_check
      _
    $region27: #{mlp_forward.1} parent=1 // pred_check_branch
      %58 = sbr.rel (0) target = $region29
    $region28: #{mlp_forward.1} parent=1 // pred_region
      _
    $region29: #{mlp_forward.1} parent=1 // pred_fallthru
      _
    // Predicated region
    $region30: #{mlp_forward.1} parent=1 // pred_check
      _
    $region31: #{mlp_forward.1} parent=1 // pred_check_branch
      %60 = sbr.rel (0) target = $region33
    $region32: #{mlp_forward.1} parent=1 // pred_region
      %61 = dma.done [#allocation3], 1024
    $region33: #{mlp_forward.1} parent=1 // pred_fallthru
      _
    // Predicated region
    $region34: #{mlp_forward.1} parent=1 // pred_check
      _
    $region35: #{mlp_forward.1} parent=1 // pred_check_branch
      %63 = sbr.rel (0) target = $region37
    $region36: #{mlp_forward.1} parent=1 // pred_region
      %64 = dma.done [#allocation6], 1024
    $region37: #{mlp_forward.1} parent=1 // pred_fallthru
      _
    // Predicated region
    $region38: #{mlp_forward.1} parent=1 // pred_check
      _
    $region39: #{mlp_forward.1} parent=1 // pred_check_branch
      %66 = sbr.rel (0) target = $region41
    $region40: #{mlp_forward.1} parent=1 // pred_region
      %67 = dma.done [#allocation6], 1024
    $region41: #{mlp_forward.1} parent=1 // pred_fallthru
      _
    %v69 = vld [vmem:[%s0] sm:$0xf]
    %v70 = vld [vmem:[#allocation2] sm:$0xf]
    %v71 = vld [vmem:[#allocation2 + $0x4] sm:$0xf]
    %v72 = vld [vmem:[#allocation2 + $0x8] sm:$0xf]
    %v73 = vld [vmem:[#allocation2 + $0xc] sm:$0xf]
    %v74 = vld [vmem:[#allocation2 + $0x10] sm:$0xf]
    %v75 = vld [vmem:[#allocation2 + $0x14] sm:$0xf]
    %v76 = vld [vmem:[#allocation2 + $0x18] sm:$0xf]
    %v77 = vld [vmem:[#allocation2 + $0x1c] sm:$0xf]
    %v78 = vld [vmem:[#allocation2 + $0x20] sm:$0xf]
    %v79 = vld [vmem:[#allocation2 + $0x24] sm:$0xf]
    %v80 = vld [vmem:[#allocation2 + $0x28] sm:$0xf]
    %v81 = vld [vmem:[#allocation2 + $0x2c] sm:$0xf]
    %v82 = vld [vmem:[#allocation2 + $0x30] sm:$0xf]
    %v83 = vld [vmem:[#allocation2 + $0x34] sm:$0xf]
    %v84 = vld [vmem:[#allocation2 + $0x38] sm:$0xf]
    %v85 = vld [vmem:[#allocation2 + $0x3c] sm:$0xf]
    %v102 = vunpack.c.l.b16 %v70
    %v103 = vunpack.c.l.b16 %v71
    %v104 = vunpack.c.l.b16 %v72
    %v105 = vunpack.c.l.b16 %v73
    %v106 = vunpack.c.l.b16 %v74
    %v107 = vunpack.c.l.b16 %v75
    %v108 = vunpack.c.l.b16 %v76
    %v109 = vunpack.c.l.b16 %v77
    %v110 = vunpack.c.l.b16 %v78
    %v111 = vunpack.c.l.b16 %v79
    %v112 = vunpack.c.l.b16 %v80
    %v113 = vunpack.c.l.b16 %v81
    %v114 = vunpack.c.l.b16 %v82
    %v115 = vunpack.c.l.b16 %v83
    %v116 = vunpack.c.l.b16 %v84
    %v117 = vunpack.c.l.b16 %v85
    %v118 = vpack.c.b16 %v103, %v102
    %v119 = vpack.c.b16 %v105, %v104
    %v120 = vpack.c.b16 %v107, %v106
    %v121 = vpack.c.b16 %v109, %v108
    %v122 = vpack.c.b16 %v111, %v110
    %v123 = vpack.c.b16 %v113, %v112
    %v124 = vpack.c.b16 %v115, %v114
    %v125 = vpack.c.b16 %v117, %v116
    %134 = vmatprep.subr.bf16.mxu0 0
    %135 = vmatpush1.bf16.msra.mxu0 %v118
    %136 = vmatprep.subr.bf16.mxu0 0
    %137 = vmatpush1.bf16.msra.mxu0 %v119
    %138 = vmatprep.subr.bf16.mxu0 0
    %139 = vmatpush1.bf16.msra.mxu0 %v120
    %140 = vmatprep.subr.bf16.mxu0 0
    %141 = vmatpush1.bf16.msra.mxu0 %v121
    %142 = vmatprep.subr.bf16.mxu0 0
    %143 = vmatpush1.bf16.msra.mxu0 %v122
    %144 = vmatprep.subr.bf16.mxu0 0
    %145 = vmatpush1.bf16.msra.mxu0 %v123
    %146 = vmatprep.subr.bf16.mxu0 0
    %147 = vmatpush1.bf16.msra.mxu0 %v124
    %148 = vmatprep.subr.bf16.mxu0 0
    %149 = vmatpush1.bf16.msra.mxu0 %v125
    %150 = vmatprep.subr.bf16.mxu0 0
    %151 = vmatpush1.bf16.msra.mxu0 0
    %152 = vmatprep.subr.bf16.mxu0 0
    %153 = vmatpush1.bf16.msra.mxu0 0
    %154 = vmatprep.subr.bf16.mxu0 0
    %155 = vmatpush1.bf16.msra.mxu0 0
    %156 = vmatprep.subr.bf16.mxu0 0
    %157 = vmatpush1.bf16.msra.mxu0 0
    %158 = vmatprep.subr.bf16.mxu0 0
    %159 = vmatpush1.bf16.msra.mxu0 0
    %160 = vmatprep.subr.bf16.mxu0 0
    %161 = vmatpush1.bf16.msra.mxu0 0
    %162 = vmatprep.subr.bf16.mxu0 0
    %163 = vmatpush1.bf16.msra.mxu0 0
    %164 = vmatprep.subr.bf16.mxu0 0
    %165 = vmatpush1.bf16.msra.mxu0 0
    %166 = vmatprep.mubr.bf16.mxu0 0
    %167 = vmatmul.mubr.bf16.gmra.mrb[0].mxu0 %v69
    %v168 = vpop.f32.mrb[0].mxu0
    %v169 = vadd.f32 0.0, %v168
    %v170 = vpop.f32.mrb[0].mxu0
    %v171 = vpop.f32.mrb[0].mxu0
    %v172 = vpop.f32.mrb[0].mxu0
    %173 = vdwg.mxu0
    %v174 = vrot.slane %v169, 4
    %v175 = vadd.f32 %v169, %v174
    %v176 = vrot.slane %v175, 2
    %v177 = vadd.f32 %v175, %v176
    %v178 = vrot.slane %v177, 1
    %v179 = vadd.f32 %v177, %v178
    %v180 = vmul.f32 %v179, 0.125
    %v181 = vmul.f32 %v169, %v169
    %v182 = vrot.slane %v181, 4
    %v183 = vadd.f32 %v181, %v182
    %v184 = vrot.slane %v183, 2
    %v185 = vadd.f32 %v183, %v184
    %v186 = vrot.slane %v185, 1
    %v187 = vadd.f32 %v185, %v186
    %v188 = vmul.f32 %v187, 0.125
    %v189 = vmul.f32 %v180, %v180
    %v190 = vsub.f32 %v188, %v189
    %v191 = vadd.f32 %v190, 1e-05
    %v192 = vrsqrt.pop %v191
    %v193 = vld [vmem:[%s2] sm:$0x1]
    %v194 = vmul.f32 %v192, %v193
    %v195 = vld [vmem:[%s2 + $0x1] sm:$0x1]
    %v196 = vmul.f32 %v180, %v194
    %v197 = vsub.f32 %v195, %v196
    %v198 = vlaneseq
    %v199 = vshrl.u32 %v198, 7
    %v200 = vsub.s32 0, %v199
    %v201 = vrot.slane %v194, %v200
    %v202 = vmul.f32 %v169, %v201
    %v203 = vlaneseq
    %v204 = vshrl.u32 %v203, 7
    %v205 = vsub.s32 0, %v204
    %v206 = vrot.slane %v197, %v205
    %v207 = vadd.f32 %v202, %v206
    %v208 = vmax.f32 %v207, 0.0
    %v209 = vpack.c.bf16 %v208, %v208
    %v210 = vld [vmem:[#allocation5] sm:$0xf]
    %v211 = vld [vmem:[#allocation5 + $0x4] sm:$0xf]
    %v212 = vld [vmem:[#allocation5 + $0x8] sm:$0xf]
    %v213 = vld [vmem:[#allocation5 + $0xc] sm:$0xf]
    %v214 = vld [vmem:[#allocation5 + $0x10] sm:$0xf]
    %v215 = vld [vmem:[#allocation5 + $0x14] sm:$0xf]
    %v216 = vld [vmem:[#allocation5 + $0x18] sm:$0xf]
    %v217 = vld [vmem:[#allocation5 + $0x1c] sm:$0xf]
    %v218 = vld [vmem:[#allocation5 + $0x20] sm:$0xf]
    %v219 = vld [vmem:[#allocation5 + $0x24] sm:$0xf]
    %v220 = vld [vmem:[#allocation5 + $0x28] sm:$0xf]
    %v221 = vld [vmem:[#allocation5 + $0x2c] sm:$0xf]
    %v222 = vld [vmem:[#allocation5 + $0x30] sm:$0xf]
    %v223 = vld [vmem:[#allocation5 + $0x34] sm:$0xf]
    %v224 = vld [vmem:[#allocation5 + $0x38] sm:$0xf]
    %v225 = vld [vmem:[#allocation5 + $0x3c] sm:$0xf]
    %v242 = vunpack.c.l.b16 %v210
    %v243 = vunpack.c.l.b16 %v211
    %v244 = vunpack.c.l.b16 %v212
    %v245 = vunpack.c.l.b16 %v213
    %v246 = vunpack.c.l.b16 %v214
    %v247 = vunpack.c.l.b16 %v215
    %v248 = vunpack.c.l.b16 %v216
    %v249 = vunpack.c.l.b16 %v217
    %v250 = vunpack.c.l.b16 %v218
    %v251 = vunpack.c.l.b16 %v219
    %v252 = vunpack.c.l.b16 %v220
    %v253 = vunpack.c.l.b16 %v221
    %v254 = vunpack.c.l.b16 %v222
    %v255 = vunpack.c.l.b16 %v223
    %v256 = vunpack.c.l.b16 %v224
    %v257 = vunpack.c.l.b16 %v225
    %v258 = vpack.c.b16 %v243, %v242
    %v259 = vpack.c.b16 %v245, %v244
    %v260 = vpack.c.b16 %v247, %v246
    %v261 = vpack.c.b16 %v249, %v248
    %v262 = vpack.c.b16 %v251, %v250
    %v263 = vpack.c.b16 %v253, %v252
    %v264 = vpack.c.b16 %v255, %v254
    %v265 = vpack.c.b16 %v257, %v256
    %274 = vmatprep.subr.bf16.mxu0 0
    %275 = vmatpush1.bf16.msra.mxu0 %v258
    %276 = vmatprep.subr.bf16.mxu0 0
    %277 = vmatpush1.bf16.msra.mxu0 %v259
    %278 = vmatprep.subr.bf16.mxu0 0
    %279 = vmatpush1.bf16.msra.mxu0 %v260
    %280 = vmatprep.subr.bf16.mxu0 0
    %281 = vmatpush1.bf16.msra.mxu0 %v261
    %282 = vmatprep.subr.bf16.mxu0 0
    %283 = vmatpush1.bf16.msra.mxu0 %v262
    %284 = vmatprep.subr.bf16.mxu0 0
    %285 = vmatpush1.bf16.msra.mxu0 %v263
    %286 = vmatprep.subr.bf16.mxu0 0
    %287 = vmatpush1.bf16.msra.mxu0 %v264
    %288 = vmatprep.subr.bf16.mxu0 0
    %289 = vmatpush1.bf16.msra.mxu0 %v265
    %290 = vmatprep.subr.bf16.mxu0 0
    %291 = vmatpush1.bf16.msra.mxu0 0
    %292 = vmatprep.subr.bf16.mxu0 0
    %293 = vmatpush1.bf16.msra.mxu0 0
    %294 = vmatprep.subr.bf16.mxu0 0
    %295 = vmatpush1.bf16.msra.mxu0 0
    %296 = vmatprep.subr.bf16.mxu0 0
    %297 = vmatpush1.bf16.msra.mxu0 0
    %298 = vmatprep.subr.bf16.mxu0 0
    %299 = vmatpush1.bf16.msra.mxu0 0
    %300 = vmatprep.subr.bf16.mxu0 0
    %301 = vmatpush1.bf16.msra.mxu0 0
    %302 = vmatprep.subr.bf16.mxu0 0
    %303 = vmatpush1.bf16.msra.mxu0 0
    %304 = vmatprep.subr.bf16.mxu0 0
    %305 = vmatpush1.bf16.msra.mxu0 0
    %306 = vmatprep.mubr.bf16.mxu0 0
    %307 = vmatmul.mubr.bf16.gmra.mrb[0].mxu0 %v209
    %v308 = vpop.f32.mrb[0].mxu0
    %v309 = vadd.f32 0.0, %v308
    %v310 = vpop.f32.mrb[0].mxu0
    %v311 = vpop.f32.mrb[0].mxu0
    %v312 = vpop.f32.mrb[0].mxu0
    %313 = vdwg.mxu0
    %v314 = vrot.slane %v309, 4
    %v315 = vadd.f32 %v309, %v314
    %v316 = vrot.slane %v315, 2
    %v317 = vadd.f32 %v315, %v316
    %v318 = vrot.slane %v317, 1
    %v319 = vadd.f32 %v317, %v318
    %v320 = vmul.f32 %v319, 0.125
    %v321 = vmul.f32 %v309, %v309
    %v322 = vrot.slane %v321, 4
    %v323 = vadd.f32 %v321, %v322
    %v324 = vrot.slane %v323, 2
    %v325 = vadd.f32 %v323, %v324
    %v326 = vrot.slane %v325, 1
    %v327 = vadd.f32 %v325, %v326
    %v328 = vmul.f32 %v327, 0.125
    %v329 = vmul.f32 %v320, %v320
    %v330 = vsub.f32 %v328, %v329
    %v331 = vadd.f32 %v330, 1e-05
    %v332 = vrsqrt.pop %v331
    %v333 = vld [vmem:[%s4] sm:$0x1]
    %v334 = vmul.f32 %v332, %v333
    %v335 = vld [vmem:[%s4 + $0x1] sm:$0x1]
    %v336 = vmul.f32 %v320, %v334
    %v337 = vsub.f32 %v335, %v336
    %v338 = vlaneseq
    %v339 = vshrl.u32 %v338, 7
    %v340 = vsub.s32 0, %v339
    %v341 = vrot.slane %v334, %v340
    %v342 = vmul.f32 %v309, %v341
    %v343 = vlaneseq
    %v344 = vshrl.u32 %v343, 7
    %v345 = vsub.s32 0, %v344
    %v346 = vrot.slane %v337, %v345
    %v347 = vadd.f32 %v342, %v346
    %v348 = vmax.f32 %v347, 0.0
    %v349 = vpack.c.bf16 %v348, %v348
    %v350 = vld [vmem:[#allocation7] sm:$0xf]
    %v351 = vld [vmem:[#allocation7 + $0x4] sm:$0xf]
    %v352 = vld [vmem:[#allocation7 + $0x8] sm:$0xf]
    %v353 = vld [vmem:[#allocation7 + $0xc] sm:$0xf]
    %v354 = vld [vmem:[#allocation7 + $0x10] sm:$0xf]
    %v355 = vld [vmem:[#allocation7 + $0x14] sm:$0xf]
    %v356 = vld [vmem:[#allocation7 + $0x18] sm:$0xf]
    %v357 = vld [vmem:[#allocation7 + $0x1c] sm:$0xf]
    %v358 = vld [vmem:[#allocation7 + $0x20] sm:$0xf]
    %v359 = vld [vmem:[#allocation7 + $0x24] sm:$0xf]
    %v360 = vld [vmem:[#allocation7 + $0x28] sm:$0xf]
    %v361 = vld [vmem:[#allocation7 + $0x2c] sm:$0xf]
    %v362 = vld [vmem:[#allocation7 + $0x30] sm:$0xf]
    %v363 = vld [vmem:[#allocation7 + $0x34] sm:$0xf]
    %v364 = vld [vmem:[#allocation7 + $0x38] sm:$0xf]
    %v365 = vld [vmem:[#allocation7 + $0x3c] sm:$0xf]
    %v366 = vld [vmem:[%s6] sm:$0x1]
    %v368 = vlaneseq
    %v369 = vshrl.u32 %v368, 7
    %v370 = vsub.s32 0, %v369
    %v371 = vrot.slane %v366, %v370
    %v389 = vunpack.c.l.b16 %v350
    %v390 = vunpack.c.l.b16 %v351
    %v391 = vunpack.c.l.b16 %v352
    %v392 = vunpack.c.l.b16 %v353
    %v393 = vunpack.c.l.b16 %v354
    %v394 = vunpack.c.l.b16 %v355
    %v395 = vunpack.c.l.b16 %v356
    %v396 = vunpack.c.l.b16 %v357
    %v397 = vunpack.c.l.b16 %v358
    %v398 = vunpack.c.l.b16 %v359
    %v399 = vunpack.c.l.b16 %v360
    %v400 = vunpack.c.l.b16 %v361
    %v401 = vunpack.c.l.b16 %v362
    %v402 = vunpack.c.l.b16 %v363
    %v403 = vunpack.c.l.b16 %v364
    %v404 = vunpack.c.l.b16 %v365
    %v405 = vpack.c.b16 %v390, %v389
    %v406 = vpack.c.b16 %v392, %v391
    %v407 = vpack.c.b16 %v394, %v393
    %v408 = vpack.c.b16 %v396, %v395
    %v409 = vpack.c.b16 %v398, %v397
    %v410 = vpack.c.b16 %v400, %v399
    %v411 = vpack.c.b16 %v402, %v401
    %v412 = vpack.c.b16 %v404, %v403
    %421 = vmatprep.subr.bf16.mxu0 0
    %422 = vmatpush1.bf16.msra.mxu0 %v405
    %423 = vmatprep.subr.bf16.mxu0 0
    %424 = vmatpush1.bf16.msra.mxu0 %v406
    %425 = vmatprep.subr.bf16.mxu0 0
    %426 = vmatpush1.bf16.msra.mxu0 %v407
    %427 = vmatprep.subr.bf16.mxu0 0
    %428 = vmatpush1.bf16.msra.mxu0 %v408
    %429 = vmatprep.subr.bf16.mxu0 0
    %430 = vmatpush1.bf16.msra.mxu0 %v409
    %431 = vmatprep.subr.bf16.mxu0 0
    %432 = vmatpush1.bf16.msra.mxu0 %v410
    %433 = vmatprep.subr.bf16.mxu0 0
    %434 = vmatpush1.bf16.msra.mxu0 %v411
    %435 = vmatprep.subr.bf16.mxu0 0
    %436 = vmatpush1.bf16.msra.mxu0 %v412
    %437 = vmatprep.subr.bf16.mxu0 0
    %438 = vmatpush1.bf16.msra.mxu0 0
    %439 = vmatprep.subr.bf16.mxu0 0
    %440 = vmatpush1.bf16.msra.mxu0 0
    %441 = vmatprep.subr.bf16.mxu0 0
    %442 = vmatpush1.bf16.msra.mxu0 0
    %443 = vmatprep.subr.bf16.mxu0 0
    %444 = vmatpush1.bf16.msra.mxu0 0
    %445 = vmatprep.subr.bf16.mxu0 0
    %446 = vmatpush1.bf16.msra.mxu0 0
    %447 = vmatprep.subr.bf16.mxu0 0
    %448 = vmatpush1.bf16.msra.mxu0 0
    %449 = vmatprep.subr.bf16.mxu0 0
    %450 = vmatpush1.bf16.msra.mxu0 0
    %451 = vmatprep.subr.bf16.mxu0 0
    %452 = vmatpush1.bf16.msra.mxu0 0
    %453 = vmatprep.mubr.bf16.mxu0 0
    %454 = vmatmul.mubr.bf16.gmra.mrb[0].mxu0 %v349
    %v455 = vpop.f32.mrb[0].mxu0
    %v456 = vadd.f32 %v371, %v455
    %v457 = vpop.f32.mrb[0].mxu0
    %v458 = vpop.f32.mrb[0].mxu0
    %v459 = vpop.f32.mrb[0].mxu0
    %460 = vdwg.mxu0
    %461 = vst [vmem:[#allocation8] sm:$0xff] %v456
    // Predicated region
    $region42: #{mlp_forward.1} parent=1 // pred_check
      _
    $region43: #{mlp_forward.1} parent=1 // pred_check_branch
      %463 = sbr.rel (0) target = $region45
    $region44: #{mlp_forward.1} parent=1 // pred_region
      %s465 = ssub.s32 128, 128
      %466 = vsyncadd [#allocation4], %s465
      %s468 = sshll.u32 [#allocation8], 4
      %s469 = int_to_ptr.vmem [resolvable:$true] %s468
      %471 = dma.vmem_to_hbm [thread:$0]  %s469, 128, %s7, [#allocation4]
    $region45: #{mlp_forward.1} parent=1 // pred_fallthru
      _
    // Predicated region
    $region46: #{mlp_forward.1} parent=1 // pred_check
      _
    $region47: #{mlp_forward.1} parent=1 // pred_check_branch
      %473 = sbr.rel (0) target = $region49
    $region48: #{mlp_forward.1} parent=1 // pred_region
      %474 = dma.done [#allocation4], 128
    $region49: #{mlp_forward.1} parent=1 // pred_fallthru
      _
    %475 = vsyncpa [#allocation3], 1
    %476 = vsyncpa [#allocation6], 1
    %477 = vsyncpa [#allocation4], 1

</llo_original>
